<compile_context>
chip_gen: v7x
topology: tpu7x:2x2x1
jax: 0.10.0
libtpu: 0.0.40
codegen_flags: <defaults>
</compile_context>

<pallas_src>
import jax
import jax.numpy as jnp
from jax import lax
from jax.experimental import pallas as pl
from jax.experimental.pallas import tpu as pltpu


def _num_tensorcores() -> int:
    """Best-effort TensorCore count (2 on v7x); safe fallback is 1."""
    try:
        info = pltpu.get_tpu_info()
    except Exception:
        return 1
    for attr in ("num_cores", "core_count", "num_tensorcores", "tensorcore_count"):
        v = getattr(info, attr, None)
        if v is None:
            continue
        try:
            v = int(v)
        except Exception:
            continue
        if v > 0:
            return v
    return 1


def _make_kernel(alphas, score_name, W, *, minor, tile_rows, acc_rows, m_valid,
                 tiles_per_chunk, n_tiles, compute_dtype):
    """X-dependent part of sum_i S(v_i, e_i, X, alpha_i), summed per chunk."""
    alphas = [float(a) for a in alphas]
    W = float(W)
    quant = (score_name == "quant")
    rows_per_alpha = 3 if quant else 2
    needs_mask = (m_valid % tile_rows) != 0
    cdt = compute_dtype

    def kernel(params_ref, x_ref, o_ref, acc_ref):
        p = pl.program_id(0)
        j = pl.program_id(1)

        @pl.when(j == 0)
        def _init():
            acc_ref[...] = jnp.zeros_like(acc_ref)

        X = x_ref[...].astype(cdt)                          # [tile_rows, minor]

        def prow(r):                                        # [1, minor] broadcast row
            return params_ref[r:r + 1, :].astype(cdt)

        if quant:
            g1x = jnp.asarray(-0.5 * W, cdt) * (X * X)      # shared by all alphas

        rt_tot = None
        for i, alpha in enumerate(alphas):
            base = rows_per_alpha * i
            v = prow(base)
            if alpha < 0.5:
                a = alpha
                diff = v - X        # ind == (X <= v) == (diff >= 0)
            else:
                a = 1.0 - alpha
                diff = X - v        # ind == (X >= v) == (diff >= 0)
            w = jnp.where(diff >= 0,
                          jnp.asarray(1.0 - a, cdt),
                          jnp.asarray(-a, cdt))             # == ind - a
            relu = jnp.maximum(diff, jnp.asarray(0.0, cdt))  # == ind * diff
            if quant:
                g1v = prow(base + 1)                        # -W/2 * v^2
                coef = prow(base + 2)                       # +-e (1/a * G2 folded)
                term = w * (g1v - g1x) + coef * relu
            else:
                slope = prow(base + 1)                      # (scale2/a)*exp(+-e/scale2)
                term = w * diff + slope * relu
            rt_tot = term if rt_tot is None else rt_tot + term

        def fold(rt):
            # tile -> (acc_rows, minor): pure vreg adds, no cross-lane work.
            if tile_rows != acc_rows:
                rt = rt.reshape(tile_rows // acc_rows, acc_rows, minor).sum(axis=0)
            acc_ref[...] += rt.astype(jnp.float32)

        if needs_mask:
            t = p * tiles_per_chunk + j
            is_edge = t == (n_tiles - 1)                    # only this tile overhangs

            @pl.when(is_edge)
            def _masked():
                ridx = lax.broadcasted_iota(jnp.int32, rt_tot.shape, 0)
                valid = (ridx + t * tile_rows) < m_valid
                fold(jnp.where(valid, rt_tot, jnp.zeros_like(rt_tot)))

            @pl.when(jnp.logical_not(is_edge))
            def _plain():
                fold(rt_tot)
        else:
            fold(rt_tot)

        @pl.when(j == tiles_per_chunk - 1)
        def _finalize():
            total = jnp.sum(acc_ref[...])                   # one small XLU sweep
            o_ref[...] = jnp.zeros(o_ref.shape, jnp.float32) + total

    return kernel


class ScorePallas:
    """JAX/Pallas port of the PyTorch `Score` module (all alphas fused).

    compute_dtype=jnp.bfloat16 is recommended on v6e/v7x (2x VPU packing);
    keep the default float32 on v5e or when exact f32 accuracy is required.
    """

    def __init__(self, alphas, score="quant", W=1.0, scale2=1.0,
                 compute_dtype=jnp.float32):
        if score not in ("quant", "stats"):
            raise ValueError("score must be 'quant' or 'stats'")
        self.alphas = [float(a) for a in alphas]
        self.score_name = score
        self.W = float(W)
        self.scale2 = float(scale2)
        self.compute_dtype = jnp.dtype(compute_dtype)

    def __call__(self, PNL_validity, PNL):
        PNL_validity = jnp.asarray(PNL_validity, jnp.float32)
        PNL = jnp.asarray(PNL, jnp.float32)
        N, B = PNL.shape
        A = len(self.alphas)
        assert PNL_validity.shape == (B, 2 * A)
        quant = self.score_name == "quant"

        # ---- hoist every X-independent quantity to tiny wrapper-side ops ----
        rows = []                     # per-alpha parameter rows, each [B]
        const = jnp.float32(0.0)      # additive X-independent part of the loss
        for i, alpha in enumerate(self.alphas):
            v = PNL_validity[:, 2 * i]
            e = PNL_validity[:, 2 * i + 1]
            a = alpha if alpha < 0.5 else 1.0 - alpha
            if quant:
                rows += [v, (-0.5 * self.W) * v * v, e if alpha < 0.5 else -e]
                c_i = a * (0.5 * e * e - e * v)
            else:
                s = 1.0 if alpha < 0.5 else -1.0
                ge = self.scale2 * jnp.exp((s / self.scale2) * e)
                rows += [v, ge / a]
                c_i = ge * (s * (e - v) - self.scale2)
            const = const + jnp.mean(c_i)
        params = jnp.stack(rows, axis=0)                     # [R, B], tiny
        R = params.shape[0]

        # ---- layout: big tensor is never padded / transposed / copied ----
        flat_ok = (B <= 128) and (128 % B == 0) and (N % (128 // B) == 0)
        if flat_ok:
            minor = 128
            m_dim = (N * B) // 128
            X = PNL.reshape(m_dim, 128)                      # contiguous view: free
            params = jnp.tile(params, (1, 128 // B))         # lane l <-> b = l % B
        else:
            minor = B
            m_dim = N
            X = PNL                                          # [N, B] as-is

        # ---- ~2 MiB VMEM tiles along the major axis (account for lane padding)
        granule = 16 if self.compute_dtype == jnp.bfloat16 else 8
        lane_padded = ((minor + 127) // 128) * 128
        desired = ((2 << 20) // (4 * lane_padded) // granule) * granule
        desired = max(granule, desired)
        if m_dim >= granule:
            tile_rows = min(desired, (m_dim // granule) * granule)
        else:
            tile_rows = m_dim                                # single tiny tile
        n_tiles = -(-m_dim // tile_rows)
        acc_rows = granule if tile_rows % granule == 0 else tile_rows

        # Shard across TensorCores only when it is an actual win (v7x: 2 TCs);
        # exact division keeps every grid block inside the array (last one may
        # only partially overhang and is masked in-kernel).
        n_chunks = 2 if (_num_tensorcores() >= 2 and n_tiles >= 8
                         and n_tiles % 2 == 0) else 1
        tiles_per_chunk = n_tiles // n_chunks

        kernel = _make_kernel(
            self.alphas, self.score_name, self.W,
            minor=minor, tile_rows=tile_rows, acc_rows=acc_rows, m_valid=m_dim,
            tiles_per_chunk=tiles_per_chunk, n_tiles=n_tiles,
            compute_dtype=self.compute_dtype)

        partials = pl.pallas_call(
            kernel,
            out_shape=jax.ShapeDtypeStruct((n_chunks, 8, 128), jnp.float32),
            grid_spec=pltpu.PrefetchScalarGridSpec(
                num_scalar_prefetch=0,
                grid=(n_chunks, tiles_per_chunk),
                in_specs=[
                    pl.BlockSpec((R, minor), lambda p, j: (0, 0)),       # params (resident)
                    pl.BlockSpec((tile_rows, minor),
                                 lambda p, j: (p * tiles_per_chunk + j, 0)),  # X (pipelined)
                ],
                out_specs=pl.BlockSpec((1, 8, 128), lambda p, j: (p, 0, 0)),
                scratch_shapes=[pltpu.VMEM((acc_rows, minor), jnp.float32)],
            ),
            compiler_params=pltpu.CompilerParams(
                dimension_semantics=("parallel", "arbitrary")),
        )(params, X)

        return jnp.sum(partials[:, 0, 0]) / jnp.float32(N * B) + const


def _score_reference(alphas, score_name, W, scale2, PNL_validity, PNL):
    """Pure-JAX transcription of the PyTorch Score module (for validation)."""
    X = PNL.T
    loss = jnp.float32(0.0)
    for i, alpha in enumerate(alphas):
        v = PNL_validity[:, 2 * i:2 * i + 1]
        e = PNL_validity[:, 2 * i + 1:2 * i + 2]
        if score_name == "quant":
            g1 = lambda z: -W * z ** 2 / 2
            if alpha < 0.5:
                ind = (X <= v).astype(jnp.float32)
                rt = ((ind - alpha) * (g1(v) - g1(X))
                      + 1.0 / alpha * (alpha * e) * ind * (v - X)
                      + (alpha * e) * (e - v) - alpha * e ** 2 / 2)
            else:
                ai = 1.0 - alpha
                ind = (X >= v).astype(jnp.float32)
                rt = ((ind - ai) * (g1(v) - g1(X))
                      + 1.0 / ai * (ai * (-e)) * ind * (X - v)
                      + (ai * (-e)) * (v - e) - ai * e ** 2 / 2)
        else:
            g2 = lambda z: scale2 * jnp.exp(z / scale2)
            g2in = lambda z: scale2 ** 2 * jnp.exp(z / scale2)
            if alpha < 0.5:
                ind = (X <= v).astype(jnp.float32)
                rt = ((ind - alpha) * (v - X)
                      + 1.0 / alpha * g2(e) * ind * (v - X)
                      + g2(e) * (e - v) - g2in(e))
            else:
                ai = 1.0 - alpha
                ind = (X >= v).astype(jnp.float32)
                rt = ((ind - ai) * (X - v)
                      + 1.0 / ai * g2(-e) * ind * (X - v)
                      + g2(-e) * (v - e) - g2in(-e))
        loss = loss + jnp.mean(rt)
    return loss


if __name__ == "__main__":
    # Deterministic synthetic inputs (no checkpoints, no files).
    key = jax.random.PRNGKey(0)
    alphas = [0.01, 0.05, 0.9, 0.99]   # exercises both alpha < 0.5 and >= 0.5
    A = len(alphas)

    # (N, B) cases:
    #   (16, 8)    -> flat layout, single tile   (the small base case)
    #   (100, 136) -> cols layout, 2 tiles, masked overhang (N not a tile mult.)
    #   (1000, 64) -> flat layout, multi-tile, masked overhang
    shapes = [(16, 8), (100, 136), (1000, 64)]

    for (N, B) in shapes:
        key, k1, k2 = jax.random.split(key, 3)
        PNL_validity = jax.random.normal(k1, (B, 2 * A), dtype=jnp.float32)
        PNL = jax.random.normal(k2, (N, B), dtype=jnp.float32)
        for score_name in ("quant", "stats"):
            mod = ScorePallas(alphas, score=score_name, W=1.0, scale2=1.0)
            loss = mod(PNL_validity, PNL)
            jax.block_until_ready(loss)
            ref = _score_reference(alphas, score_name, 1.0, 1.0,
                                   PNL_validity, PNL)
            jax.block_until_ready(ref)
            err = abs(float(loss) - float(ref))
            tol = 5e-3 + 5e-4 * abs(float(ref))
            if err > tol:
                raise AssertionError(
                    f"{score_name} N={N} B={B}: pallas={float(loss)} "
                    f"ref={float(ref)} err={err}")

    # bf16 compute path (v6e/v7x optimization) -- loose sanity check only.
    N, B = 1000, 64
    key, k1, k2 = jax.random.split(key, 3)
    PNL_validity = jax.random.normal(k1, (B, 2 * A), dtype=jnp.float32)
    PNL = jax.random.normal(k2, (N, B), dtype=jnp.float32)
    mod_bf16 = ScorePallas(alphas, score="quant", W=1.0, scale2=1.0,
                           compute_dtype=jnp.bfloat16)
    loss_bf16 = mod_bf16(PNL_validity, PNL)
    jax.block_until_ready(loss_bf16)
    ref = _score_reference(alphas, "quant", 1.0, 1.0, PNL_validity, PNL)
    assert bool(jnp.isfinite(loss_bf16)), "bf16 path produced non-finite loss"
    assert abs(float(loss_bf16) - float(ref)) <= 0.1 * (1.0 + abs(float(ref))), \
        "bf16 path too far from f32 reference"

    print("KERNEL_OK")
</pallas_src>

<mosaic_0001>
module attributes {stable_mosaic.version = 11 : i64} {
  func.func @kernel(%arg0: i32, %arg1: i32, %arg2: memref<12x128xf32, #tpu.memory_space<vmem>>, %arg3: memref<1x128xf32, #tpu.memory_space<vmem>>, %arg4: memref<1x8x128xf32, #tpu.memory_space<vmem>>, %arg5: memref<1x128xf32, #tpu.memory_space<vmem>>) attributes {dimension_semantics = [#tpu.dimension_semantics<parallel>, #tpu.dimension_semantics<arbitrary>], iteration_bounds = array<i64: 1, 1>, scalar_prefetch = 0 : i64, scratch_operands = 1 : i64, tpu.core_type = #tpu.core_type<tc>, window_params = [{pipeline_mode = #tpu.pipeline_mode<synchronous>, transform_indices = @transform_0, window_bounds = array<i64: 12, 128>}, {transform_indices = @transform_1, window_bounds = array<i64: 1, 128>}, {transform_indices = @transform_2, window_bounds = array<i64: 1, 8, 128>}]} {
    %c0_i32 = arith.constant 0 : i32
    %0 = arith.cmpi eq, %arg1, %c0_i32 : i32
    %1 = arith.extui %0 : i1 to i32
    %c0_i32_0 = arith.constant 0 : i32
    %2 = arith.cmpi ne, %1, %c0_i32_0 : i32
    scf.if %2 {
      %cst_37 = arith.constant 0.000000e+00 : f32
      %76 = vector.broadcast %cst_37 : f32 to vector<1x128xf32>
      %c0_38 = arith.constant 0 : index
      %c0_39 = arith.constant 0 : index
      %77 = vector.load %arg5[%c0_38, %c0_39] : memref<1x128xf32, #tpu.memory_space<vmem>>, vector<1x128xf32>
      tpu.vector_store %arg5[%c0_38, %c0_39], %76 {strides = array<i32>} : memref<1x128xf32, #tpu.memory_space<vmem>>, vector<1x128xf32>,
    } else {
    }
    %c0 = arith.constant 0 : index
    %c0_1 = arith.constant 0 : index
    %3 = vector.load %arg3[%c0, %c0_1] : memref<1x128xf32, #tpu.memory_space<vmem>>, vector<1x128xf32>
    %4 = arith.mulf %3, %3 : vector<1x128xf32>
    %cst = arith.constant -5.000000e-01 : f32
    %5 = vector.broadcast %cst : f32 to vector<1x128xf32>
    %6 = arith.mulf %5, %4 : vector<1x128xf32>
    %c0_2 = arith.constant 0 : index
    %c0_3 = arith.constant 0 : index
    %7 = vector.load %arg2[%c0_2, %c0_3] : memref<12x128xf32, #tpu.memory_space<vmem>>, vector<1x128xf32>
    %8 = arith.subf %7, %3 : vector<1x128xf32>
    %cst_4 = arith.constant 0.000000e+00 : f32
    %9 = vector.broadcast %cst_4 : f32 to vector<1x128xf32>
    %10 = arith.cmpf oge, %8, %9 : vector<1x128xf32>
    %cst_5 = arith.constant 9.900000e-01 : f32
    %cst_6 = arith.constant -0.00999999977 : f32
    %11 = vector.broadcast %cst_5 : f32 to vector<1x128xf32>
    %12 = vector.broadcast %cst_6 : f32 to vector<1x128xf32>
    %13 = arith.select %10, %11, %12 : vector<1x128xi1>, vector<1x128xf32>
    %cst_7 = arith.constant 0.000000e+00 : f32
    %14 = vector.broadcast %cst_7 : f32 to vector<1x128xf32>
    %15 = arith.maximumf %8, %14 : vector<1x128xf32>
    %c1 = arith.constant 1 : index
    %c0_8 = arith.constant 0 : index
    %16 = vector.load %arg2[%c1, %c0_8] : memref<12x128xf32, #tpu.memory_space<vmem>>, vector<1x128xf32>
    %c2 = arith.constant 2 : index
    %c0_9 = arith.constant 0 : index
    %17 = vector.load %arg2[%c2, %c0_9] : memref<12x128xf32, #tpu.memory_space<vmem>>, vector<1x128xf32>
    %18 = arith.subf %16, %6 : vector<1x128xf32>
    %19 = arith.mulf %13, %18 : vector<1x128xf32>
    %20 = arith.mulf %17, %15 : vector<1x128xf32>
    %21 = arith.addf %19, %20 : vector<1x128xf32>
    %c3 = arith.constant 3 : index
    %c0_10 = arith.constant 0 : index
    %22 = vector.load %arg2[%c3, %c0_10] : memref<12x128xf32, #tpu.memory_space<vmem>>, vector<1x128xf32>
    %23 = arith.subf %22, %3 : vector<1x128xf32>
    %cst_11 = arith.constant 0.000000e+00 : f32
    %24 = vector.broadcast %cst_11 : f32 to vector<1x128xf32>
    %25 = arith.cmpf oge, %23, %24 : vector<1x128xf32>
    %cst_12 = arith.constant 0.949999988 : f32
    %cst_13 = arith.constant -5.000000e-02 : f32
    %26 = vector.broadcast %cst_12 : f32 to vector<1x128xf32>
    %27 = vector.broadcast %cst_13 : f32 to vector<1x128xf32>
    %28 = arith.select %25, %26, %27 : vector<1x128xi1>, vector<1x128xf32>
    %cst_14 = arith.constant 0.000000e+00 : f32
    %29 = vector.broadcast %cst_14 : f32 to vector<1x128xf32>
    %30 = arith.maximumf %23, %29 : vector<1x128xf32>
    %c4 = arith.constant 4 : index
    %c0_15 = arith.constant 0 : index
    %31 = vector.load %arg2[%c4, %c0_15] : memref<12x128xf32, #tpu.memory_space<vmem>>, vector<1x128xf32>
    %c5 = arith.constant 5 : index
    %c0_16 = arith.constant 0 : index
    %32 = vector.load %arg2[%c5, %c0_16] : memref<12x128xf32, #tpu.memory_space<vmem>>, vector<1x128xf32>
    %33 = arith.subf %31, %6 : vector<1x128xf32>
    %34 = arith.mulf %28, %33 : vector<1x128xf32>
    %35 = arith.mulf %32, %30 : vector<1x128xf32>
    %36 = arith.addf %34, %35 : vector<1x128xf32>
    %37 = arith.addf %21, %36 : vector<1x128xf32>
    %c6 = arith.constant 6 : index
    %c0_17 = arith.constant 0 : index
    %38 = vector.load %arg2[%c6, %c0_17] : memref<12x128xf32, #tpu.memory_space<vmem>>, vector<1x128xf32>
    %39 = arith.subf %3, %38 : vector<1x128xf32>
    %cst_18 = arith.constant 0.000000e+00 : f32
    %40 = vector.broadcast %cst_18 : f32 to vector<1x128xf32>
    %41 = arith.cmpf oge, %39, %40 : vector<1x128xf32>
    %cst_19 = arith.constant 0.899999976 : f32
    %cst_20 = arith.constant -1.000000e-01 : f32
    %42 = vector.broadcast %cst_19 : f32 to vector<1x128xf32>
    %43 = vector.broadcast %cst_20 : f32 to vector<1x128xf32>
    %44 = arith.select %41, %42, %43 : vector<1x128xi1>, vector<1x128xf32>
    %cst_21 = arith.constant 0.000000e+00 : f32
    %45 = vector.broadcast %cst_21 : f32 to vector<1x128xf32>
    %46 = arith.maximumf %39, %45 : vector<1x128xf32>
    %c7 = arith.constant 7 : index
    %c0_22 = arith.constant 0 : index
    %47 = vector.load %arg2[%c7, %c0_22] : memref<12x128xf32, #tpu.memory_space<vmem>>, vector<1x128xf32>
    %c8 = arith.constant 8 : index
    %c0_23 = arith.constant 0 : index
    %48 = vector.load %arg2[%c8, %c0_23] : memref<12x128xf32, #tpu.memory_space<vmem>>, vector<1x128xf32>
    %49 = arith.subf %47, %6 : vector<1x128xf32>
    %50 = arith.mulf %44, %49 : vector<1x128xf32>
    %51 = arith.mulf %48, %46 : vector<1x128xf32>
    %52 = arith.addf %50, %51 : vector<1x128xf32>
    %53 = arith.addf %37, %52 : vector<1x128xf32>
    %c9 = arith.constant 9 : index
    %c0_24 = arith.constant 0 : index
    %54 = vector.load %arg2[%c9, %c0_24] : memref<12x128xf32, #tpu.memory_space<vmem>>, vector<1x128xf32>
    %55 = arith.subf %3, %54 : vector<1x128xf32>
    %cst_25 = arith.constant 0.000000e+00 : f32
    %56 = vector.broadcast %cst_25 : f32 to vector<1x128xf32>
    %57 = arith.cmpf oge, %55, %56 : vector<1x128xf32>
    %cst_26 = arith.constant 9.900000e-01 : f32
    %cst_27 = arith.constant -0.00999999977 : f32
    %58 = vector.broadcast %cst_26 : f32 to vector<1x128xf32>
    %59 = vector.broadcast %cst_27 : f32 to vector<1x128xf32>
    %60 = arith.select %57, %58, %59 : vector<1x128xi1>, vector<1x128xf32>
    %cst_28 = arith.constant 0.000000e+00 : f32
    %61 = vector.broadcast %cst_28 : f32 to vector<1x128xf32>
    %62 = arith.maximumf %55, %61 : vector<1x128xf32>
    %c10 = arith.constant 10 : index
    %c0_29 = arith.constant 0 : index
    %63 = vector.load %arg2[%c10, %c0_29] : memref<12x128xf32, #tpu.memory_space<vmem>>, vector<1x128xf32>
    %c11 = arith.constant 11 : index
    %c0_30 = arith.constant 0 : index
    %64 = vector.load %arg2[%c11, %c0_30] : memref<12x128xf32, #tpu.memory_space<vmem>>, vector<1x128xf32>
    %65 = arith.subf %63, %6 : vector<1x128xf32>
    %66 = arith.mulf %60, %65 : vector<1x128xf32>
    %67 = arith.mulf %64, %62 : vector<1x128xf32>
    %68 = arith.addf %66, %67 : vector<1x128xf32>
    %69 = arith.addf %53, %68 : vector<1x128xf32>
    %c0_31 = arith.constant 0 : index
    %c0_32 = arith.constant 0 : index
    %70 = vector.load %arg5[%c0_31, %c0_32] : memref<1x128xf32, #tpu.memory_space<vmem>>, vector<1x128xf32>
    %71 = arith.addf %70, %69 : vector<1x128xf32>
    %c0_33 = arith.constant 0 : index
    %c0_34 = arith.constant 0 : index
    %72 = vector.load %arg5[%c0_33, %c0_34] : memref<1x128xf32, #tpu.memory_space<vmem>>, vector<1x128xf32>
    tpu.vector_store %arg5[%c0_33, %c0_34], %71 {strides = array<i32>} : memref<1x128xf32, #tpu.memory_space<vmem>>, vector<1x128xf32>,
    %c0_i32_35 = arith.constant 0 : i32
    %73 = arith.cmpi eq, %arg1, %c0_i32_35 : i32
    %74 = arith.extui %73 : i1 to i32
    %c0_i32_36 = arith.constant 0 : i32
    %75 = arith.cmpi ne, %74, %c0_i32_36 : i32
    scf.if %75 {
      %c0_37 = arith.constant 0 : index
      %c0_38 = arith.constant 0 : index
      %76 = vector.load %arg5[%c0_37, %c0_38] : memref<1x128xf32, #tpu.memory_space<vmem>>, vector<1x128xf32>
      %77 = vector.shape_cast %76 : vector<1x128xf32> to vector<1x1x128xf32>
      %cst_39 = arith.constant dense<0.000000e+00> : vector<1xf32>
      %78 = vector.multi_reduction <add>, %77, %cst_39 [1, 2] : vector<1x1x128xf32> to vector<1xf32>
      %79 = vector.shape_cast %78 : vector<1xf32> to vector<1x1x1xf32>
      %80 = vector.extract %79[0, 0, 0] : f32 from vector<1x1x1xf32>
      %cst_40 = arith.constant 0.000000e+00 : f32
      %81 = vector.broadcast %cst_40 : f32 to vector<1x8x128xf32>
      %82 = vector.broadcast %80 : f32 to vector<1x8x128xf32>
      %83 = arith.addf %81, %82 : vector<1x8x128xf32>
      %c0_41 = arith.constant 0 : index
      %c0_42 = arith.constant 0 : index
      %c0_43 = arith.constant 0 : index
      %84 = vector.load %arg4[%c0_41, %c0_42, %c0_43] : memref<1x8x128xf32, #tpu.memory_space<vmem>>, vector<1x8x128xf32>
      tpu.vector_store %arg4[%c0_41, %c0_42, %c0_43], %83 {strides = array<i32>} : memref<1x8x128xf32, #tpu.memory_space<vmem>>, vector<1x8x128xf32>,
    } else {
    }
    return
  }
  func.func @transform_0(%arg0: i32, %arg1: i32) -> (i32, i32) {
    %c0_i32 = arith.constant 0 : i32
    %c0_i32_0 = arith.constant 0 : i32
    %c0_i32_1 = arith.constant 0 : i32
    return %c0_i32, %c0_i32_0 : i32, i32
  }
  func.func @transform_1(%arg0: i32, %arg1: i32) -> (i32, i32) {
    %c1_i32 = arith.constant 1 : i32
    %0 = arith.muli %arg0, %c1_i32 : i32
    %1 = arith.addi %0, %arg1 : i32
    %c0_i32 = arith.constant 0 : i32
    %c0_i32_0 = arith.constant 0 : i32
    return %1, %c0_i32 : i32, i32
  }
  func.func @transform_2(%arg0: i32, %arg1: i32) -> (i32, i32, i32) {
    %c0_i32 = arith.constant 0 : i32
    %c0_i32_0 = arith.constant 0 : i32
    %c0_i32_1 = arith.constant 0 : i32
    return %arg0, %c0_i32, %c0_i32_0 : i32, i32, i32
  }
}

</mosaic_0001>

<llo_original>
// kernel: tpu_custom_call.1
$region0: #{tpu_custom_call.1}
  #allocation0 [shape = 'u32[]', space=smem, size = 0x4, offset = 0x4, fixed_abs, tag = 'smem constant byte address 0x4 - core index']
  #allocation1 [shape = 'u32[144,128]{1,0:T(1,128)}', space=vmem, size = 0x12000, scoped, tag = 'internal scratch']
  #allocation2 [shape = 'f32[1,128]{1,0:T(1,128)}', space=vmem, size = 0x200, scoped, tag = 'scratch operand']
  %s0 = inlined_call_operand.hbm [shape: f32[12,128], index: 0, kind: input, shape index: {}]
  %s1 = inlined_call_operand.vmem [shape: f32[1,128], index: 1, kind: input, shape index: {}]
  %s2 = inlined_call_operand.hbm [shape: f32[1,8,128], index: 2, kind: output, shape index: {}]
  %s3 = sld [smem:[#allocation0]]
  $region30: #{tpu_custom_call.1} parent=0
    _
  %s5 = ssub.s32 1, %s3
  %s6 = scalar_select 0, %s5, %s3
  $region1: #{tpu_custom_call.1} parent=0
    #allocation3 [shape = 'u8[8192]{0}', space=vmem, size = 0x2000, scoped, tag = 'input window, operand 0, single buffered']
    #allocation4 [shape = 's32[1]{0}', space=sflag, size = 0x4, scoped, tag = 'scoped memory for tpu_custom_call.1']
    #allocation5 [shape = 's32[1]{0}', space=sflag, size = 0x4, scoped, tag = 'scoped memory for tpu_custom_call.1']
    #allocation6 [shape = 'u8[4096]{0}', space=vmem, size = 0x1000, scoped, tag = 'output window, operand 0, single buffered']
    %7 = vsyncpa [#allocation4], 0
    %8 = vsyncpa [#allocation5], 0
    // Predicated region
    $region2: #{tpu_custom_call.1} parent=1 // pred_check
      _
    $region3: #{tpu_custom_call.1} parent=1 // pred_check_branch
      %10 = sbr.rel (0) target = $region5
    $region4: #{tpu_custom_call.1} parent=1 // pred_region
      %s12 = ssub.s32 256, 256
      %13 = vsyncadd [#allocation4], %s12
      %s14 = sshll.u32 [#allocation3], 4
      %s15 = int_to_ptr.vmem [resolvable:$true] %s14
      %20 = dma.hbm_to_vmem [thread:$0]  %s0, 256, %s15, [#allocation4], 128, 128, 8
    $region5: #{tpu_custom_call.1} parent=1 // pred_fallthru
      _
    // Predicated region
    $region6: #{tpu_custom_call.1} parent=1 // pred_check
      _
    $region7: #{tpu_custom_call.1} parent=1 // pred_check_branch
      %22 = sbr.rel (0) target = $region9
    $region8: #{tpu_custom_call.1} parent=1 // pred_region
      %s23 = sadd.s32 0, 0
      %p24 = scmp.lt.s32.totalorder %s23, 0
      %s25 = scalar_select %p24, %s23, 0
      %s26 = scalar_lea.vmem %s1, %s25
      %s27 = sadd.s32 0, 0
    $region9: #{tpu_custom_call.1} parent=1 // pred_fallthru
      _
    // Predicated region
    $region10: #{tpu_custom_call.1} parent=1 // pred_check
      _
    $region11: #{tpu_custom_call.1} parent=1 // pred_check_branch
      %29 = sbr.rel (0) target = $region13
    $region12: #{tpu_custom_call.1} parent=1 // pred_region
      %30 = dma.done [#allocation4], 256
    $region13: #{tpu_custom_call.1} parent=1 // pred_fallthru
      _
    %s31 = sadd.s32 0, 0
    %p32 = scmp.lt.s32.totalorder %s31, 0
    %s33 = scalar_select %p32, %s31, 0
    %s34 = scalar_lea.vmem %s1, %s33
    %s35 = sadd.s32 0, 0
    %p36 = scmp.lt.s32.totalorder %s35, 0
    %s37 = scalar_select %p36, %s35, 0
    %s38 = scalar_lea.vmem %s1, %s37
    %s39 = sadd.s32 0, 0
    %p40 = scmp.eq.s32.totalorder 0, 0
    // Predicated region
    $region14: #{tpu_custom_call.1} parent=1 // pred_check
      %p41 = pneg %p40
    $region15: #{tpu_custom_call.1} parent=1 // pred_check_branch
      %43 = sbr.rel (%p41) target = $region17
    $region16: #{tpu_custom_call.1} parent=1 // pred_region
      %44 = vst [vmem:[#allocation2] sm:$0x1] 0.0
    $region17: #{tpu_custom_call.1} parent=1 // pred_fallthru
      _
    %v45 = vld [vmem:[%s38] sm:$0x1]
    %v46 = vmul.f32 %v45, %v45
    %v47 = vmul.f32 %v46, -0.5
    %v48 = vld [vmem:[#allocation3] sm:$0x1]
    %v49 = vsub.f32 %v48, %v45
    %vm50 = vcmp.ge.f32.partialorder %v49, 0.0
    %v51 = vsel %vm50, 0.99, -0.01
    %v52 = vmax.f32 %v49, 0.0
    %v53 = vld [vmem:[#allocation3 + $0x1] sm:$0x1]
    %v54 = vld [vmem:[#allocation3 + $0x2] sm:$0x1]
    %v55 = vsub.f32 %v53, %v47
    %v56 = vmul.f32 %v51, %v55
    %v57 = vmul.f32 %v54, %v52
    %v58 = vadd.f32 %v56, %v57
    %v59 = vld [vmem:[#allocation3 + $0x3] sm:$0x1]
    %v60 = vsub.f32 %v59, %v45
    %vm61 = vcmp.ge.f32.partialorder %v60, 0.0
    %v62 = vsel %vm61, 0.95, -0.05
    %v63 = vmax.f32 %v60, 0.0
    %v64 = vld [vmem:[#allocation3 + $0x4] sm:$0x1]
    %v65 = vld [vmem:[#allocation3 + $0x5] sm:$0x1]
    %v66 = vsub.f32 %v64, %v47
    %v67 = vmul.f32 %v62, %v66
    %v68 = vmul.f32 %v65, %v63
    %v69 = vadd.f32 %v67, %v68
    %v70 = vadd.f32 %v58, %v69
    %v71 = vld [vmem:[#allocation3 + $0x6] sm:$0x1]
    %v72 = vsub.f32 %v45, %v71
    %vm73 = vcmp.ge.f32.partialorder %v72, 0.0
    %v74 = vsel %vm73, 0.9, -0.1
    %v75 = vmax.f32 %v72, 0.0
    %v76 = vld [vmem:[#allocation3 + $0x7] sm:$0x1]
    %v77 = vld [vmem:[#allocation3 + $0x8] sm:$0x1]
    %v78 = vsub.f32 %v76, %v47
    %v79 = vmul.f32 %v74, %v78
    %v80 = vmul.f32 %v77, %v75
    %v81 = vadd.f32 %v79, %v80
    %v82 = vadd.f32 %v70, %v81
    %v83 = vld [vmem:[#allocation3 + $0x9] sm:$0x1]
    %v84 = vsub.f32 %v45, %v83
    %vm85 = vcmp.ge.f32.partialorder %v84, 0.0
    %v86 = vsel %vm85, 0.99, -0.01
    %v87 = vmax.f32 %v84, 0.0
    %v88 = vld [vmem:[#allocation3 + $0xa] sm:$0x1]
    %v89 = vld [vmem:[#allocation3 + $0xb] sm:$0x1]
    %v90 = vsub.f32 %v88, %v47
    %v91 = vmul.f32 %v86, %v90
    %v92 = vmul.f32 %v89, %v87
    %v93 = vadd.f32 %v91, %v92
    %v94 = vadd.f32 %v82, %v93
    %v95 = vld [vmem:[#allocation2] sm:$0x1]
    %v96 = vadd.f32 %v95, %v94
    %97 = vst [vmem:[#allocation2] sm:$0x1] %v96
    // Predicated region
    $region18: #{tpu_custom_call.1} parent=1 // pred_check
      %p98 = pneg %p40
    $region19: #{tpu_custom_call.1} parent=1 // pred_check_branch
      %100 = sbr.rel (%p98) target = $region21
    $region20: #{tpu_custom_call.1} parent=1 // pred_region
      %v101 = vld [vmem:[#allocation2] sm:$0x1]
      %vm102 = vcmask 1040384
      %v103 = vsel %vm102, %v101, 0.0
      %104 = vadd.xlane.f32.xlu0 %v103
      %v105 = vpop.xlane.xlu0 %104
      %v106 = vrot.slane %v105, 4
      %v107 = vadd.f32 %v105, %v106
      %v108 = vrot.slane %v107, 2
      %v109 = vadd.f32 %v107, %v108
      %v110 = vrot.slane %v109, 1
      %v111 = vadd.f32 %v109, %v110
      %s112 = vtos %v111
      %v113 = vstv %s112
      %v114 = vadd.f32 %v113, 0.0
      %115 = vst [vmem:[#allocation6] sm:$0xff] %v114
    $region21: #{tpu_custom_call.1} parent=1 // pred_fallthru
      _
    // Predicated region
    $region22: #{tpu_custom_call.1} parent=1 // pred_check
      _
    $region23: #{tpu_custom_call.1} parent=1 // pred_check_branch
      %117 = sbr.rel (0) target = $region25
    $region24: #{tpu_custom_call.1} parent=1 // pred_region
      %s119 = ssub.s32 128, 128
      %120 = vsyncadd [#allocation5], %s119
      %s122 = sshll.u32 [#allocation6], 4
      %s123 = int_to_ptr.vmem [resolvable:$true] %s122
      %125 = dma.vmem_to_hbm [thread:$0]  %s123, 128, %s2, [#allocation5]
    $region25: #{tpu_custom_call.1} parent=1 // pred_fallthru
      _
    // Predicated region
    $region26: #{tpu_custom_call.1} parent=1 // pred_check
      _
    $region27: #{tpu_custom_call.1} parent=1 // pred_check_branch
      %127 = sbr.rel (0) target = $region29
    $region28: #{tpu_custom_call.1} parent=1 // pred_region
      %128 = dma.done [#allocation5], 128
    $region29: #{tpu_custom_call.1} parent=1 // pred_fallthru
      _
    %129 = vsyncpa [#allocation4], 1
    %130 = vsyncpa [#allocation5], 1

</llo_original>
